<compile_context>
chip_gen: v6e
topology: v6e:2x2x1
jax: 0.10.0
libtpu: 0.0.40
codegen_flags: <defaults>
</compile_context>

<pallas_src>
import jax
import jax.numpy as jnp
from jax.experimental import pallas as pl
from jax.experimental.pallas import tpu as pltpu

_LANE = 128
_WIDTH_CANDIDATES = (8192, 4096, 2048, 1024, 512, 256, _LANE)


def _sublane_multiple(dtype):
    # Row granularity per vreg: 8 for 32-bit, 16 for 16-bit, 32 for 8-bit.
    return max(8, 32 // jnp.dtype(dtype).itemsize)


def _tile_bytes_and_vmem_limit():
    """Generation-aware tile size / scoped-VMEM limit."""
    kind = ""
    try:
        kind = jax.devices()[0].device_kind.lower()
    except Exception:
        pass
    if "v7" in kind or "7x" in kind:
        # v7x: 64 MiB physical VMEM per TC -> ~4 MiB tiles (16 MiB resident
        # with in+out x double-buffering), stay within the 32 MiB scoped default.
        return 4 << 20, 32 << 20
    # v5e / v6e: 128 MiB physical VMEM -> 8 MiB tiles (32 MiB resident),
    # raise the scoped limit to 64 MiB.
    return 8 << 20, 64 << 20


def _neg_scale_kernel(scale_ref, g_ref, o_ref):
    # scale_ref is a (1,1) f32 SMEM operand holding -alpha (runtime value,
    # so changing alpha never recompiles this kernel).
    o_ref[...] = (g_ref[...] * scale_ref[0, 0]).astype(o_ref.dtype)


def _run_neg_scale(neg_alpha, g):
    """Compute neg_alpha * g with a lane-dense elementwise Pallas kernel."""
    shape, dtype = g.shape, g.dtype
    n = g.size
    if n == 0:
        return g  # empty cotangent: nothing to do (avoid a (0, 128) block)

    # Widest lane-dense last dim that divides n (wide, unmasked vector stores).
    width = next((w for w in _WIDTH_CANDIDATES if n % w == 0), None)
    if width is None:
        # Rare ragged case (n % 128 != 0): a plain fused multiply is cheaper
        # than pad -> kernel -> slice (which adds two extra full HBM passes).
        return (g * neg_alpha).astype(dtype)

    rows = n // width
    slab = g.reshape(rows, width)
    scale = jnp.reshape(neg_alpha, (1, 1)).astype(jnp.float32)

    itemsize = jnp.dtype(dtype).itemsize
    tile_bytes, vmem_limit = _tile_bytes_and_vmem_limit()
    sub = _sublane_multiple(dtype)
    max_rows = max(sub, (tile_bytes // (width * itemsize)) // sub * sub)

    if rows <= max_rows:
        # Whole slab as a single block: no grid loop, no per-step overhead.
        tile_rows = rows
        grid = (1,)
    else:
        # Large-input path: ~4-8 MiB tiles; the ragged last block (when rows
        # is not a multiple of tile_rows) is masked by Pallas — no jnp.pad.
        tile_rows = max_rows
        grid = (pl.cdiv(rows, tile_rows),)

    out = pl.pallas_call(
        _neg_scale_kernel,
        out_shape=jax.ShapeDtypeStruct(slab.shape, dtype),
        grid=grid,
        in_specs=[
            pl.BlockSpec(memory_space=pltpu.MemorySpace.SMEM),   # -alpha scalar
            pl.BlockSpec((tile_rows, width), lambda i: (i, 0)),  # cotangent tile
        ],
        out_specs=pl.BlockSpec((tile_rows, width), lambda i: (i, 0)),
        compiler_params=pltpu.CompilerParams(
            dimension_semantics=("parallel",),
            vmem_limit_bytes=vmem_limit,
        ),
        # Scale the cotangent in place (no extra HBM output allocation).
        input_output_aliases={1: 0},
    )(scale, slab)

    return out.reshape(shape)


# ---------------------------------------------------------------------------
# GradientReversal: forward identity (no kernel), reversed scaled gradient.
# ---------------------------------------------------------------------------
@jax.custom_vjp
def _gradient_reversal(x, alpha):
    # Forward is pure identity: return x unchanged (no HBM copy, no launch).
    return x


def _gr_fwd(x, alpha):
    return x, alpha


def _gr_bwd(alpha, g):
    dx = _run_neg_scale(-alpha, g)
    # alpha gets no gradient (PyTorch returns None); zero cotangent here.
    return dx, jnp.zeros_like(alpha)


_gradient_reversal.defvjp(_gr_fwd, _gr_bwd)


def gradient_reversal(x, alpha):
    # alpha is normalized to a strong f32 scalar array; pass a jnp array for a
    # per-step ramp schedule so distinct values never retrigger compilation.
    return _gradient_reversal(x, jnp.asarray(alpha, dtype=jnp.float32))


class GradientReversal:
    """JAX/Pallas port of the PyTorch GradientReversal module."""

    def __init__(self, alpha):
        self.alpha = jnp.asarray(alpha, dtype=jnp.float32)

    def __call__(self, x):
        return gradient_reversal(x, self.alpha)


if __name__ == "__main__":
    key = jax.random.PRNGKey(0)
    # NCHW input, small shape consistent with the PyTorch module.
    x = jax.random.normal(key, (2, 4, 16, 16), dtype=jnp.float32)
    alpha = 0.5

    module = GradientReversal(alpha)

    # Forward: identity (no kernel launch).
    y = jax.block_until_ready(module(x))
    assert y.shape == x.shape and y.dtype == x.dtype
    assert jnp.allclose(y, x), "forward must be identity"

    # Backward: grad of sum(y) w.r.t. x is -alpha * ones (runs the Pallas kernel).
    grad_x = jax.block_until_ready(jax.grad(lambda a: jnp.sum(module(a)))(x))
    assert jnp.allclose(grad_x, -alpha * jnp.ones_like(x)), "backward mismatch"

    # Backward with a non-trivial cotangent.
    g = jax.random.normal(jax.random.PRNGKey(1), x.shape, dtype=jnp.float32)
    _, vjp_fn = jax.vjp(module, x)
    (grad_x2,) = vjp_fn(g)
    grad_x2 = jax.block_until_ready(grad_x2)
    assert jnp.allclose(grad_x2, -alpha * g, rtol=1e-6, atol=1e-6)

    # bf16 cotangent (dtype preserved) through the Pallas path.
    xb = jax.random.normal(jax.random.PRNGKey(2), (2, 4, 8, 16), dtype=jnp.bfloat16)
    _, vjp_b = jax.vjp(module, xb)
    (grad_b,) = vjp_b(jnp.ones_like(xb))
    grad_b = jax.block_until_ready(grad_b)
    assert grad_b.dtype == jnp.bfloat16
    assert jnp.allclose(grad_b.astype(jnp.float32),
                        -alpha * jnp.ones(xb.shape, jnp.float32))

    # Ragged element count (105 elems) exercises the fused-multiply fallback.
    xr = jax.random.normal(jax.random.PRNGKey(3), (3, 5, 7), dtype=jnp.float32)
    _, vjp_r = jax.vjp(module, xr)
    gr = jnp.ones_like(xr)
    (grad_r,) = vjp_r(gr)
    grad_r = jax.block_until_ready(grad_r)
    assert jnp.allclose(grad_r, -alpha * gr, rtol=1e-6, atol=1e-6)

    print("KERNEL_OK")
</pallas_src>

<mosaic_0001>
module attributes {stable_mosaic.version = 11 : i64} {
  func.func @_neg_scale_kernel(%arg0: i32, %arg1: memref<1x1xf32, #tpu.memory_space<smem>>, %arg2: memref<1x2048xf32, #tpu.memory_space<vmem>>, %arg3: memref<1x2048xf32, #tpu.memory_space<vmem>>) attributes {dimension_semantics = [#tpu.dimension_semantics<parallel>], iteration_bounds = array<i64: 1>, scalar_prefetch = 0 : i64, scratch_operands = 0 : i64, tpu.core_type = #tpu.core_type<tc>, window_params = [{transform_indices = @transform_0, window_bounds = array<i64: 1, 1>}, {transform_indices = @transform_1, window_bounds = array<i64: 1, 2048>}, {transform_indices = @transform_2, window_bounds = array<i64: 1, 2048>}]} {
    %c0 = arith.constant 0 : index
    %c0_0 = arith.constant 0 : index
    %0 = vector.load %arg2[%c0, %c0_0] : memref<1x2048xf32, #tpu.memory_space<vmem>>, vector<1x2048xf32>
    %c0_1 = arith.constant 0 : index
    %c0_2 = arith.constant 0 : index
    %1 = memref.load %arg1[%c0_1, %c0_2] : memref<1x1xf32, #tpu.memory_space<smem>>
    %2 = vector.broadcast %1 : f32 to vector<1x2048xf32>
    %3 = arith.mulf %0, %2 : vector<1x2048xf32>
    %c0_3 = arith.constant 0 : index
    %c0_4 = arith.constant 0 : index
    %4 = vector.load %arg3[%c0_3, %c0_4] : memref<1x2048xf32, #tpu.memory_space<vmem>>, vector<1x2048xf32>
    tpu.vector_store %arg3[%c0_3, %c0_4], %3 {strides = array<i32>} : memref<1x2048xf32, #tpu.memory_space<vmem>>, vector<1x2048xf32>,
    return
  }
  func.func @transform_0(%arg0: i32) -> (i32, i32) {
    %c0_i32 = arith.constant 0 : i32
    %c0_i32_0 = arith.constant 0 : i32
    %c0_i32_1 = arith.constant 0 : i32
    return %c0_i32, %c0_i32_0 : i32, i32
  }
  func.func @transform_1(%arg0: i32) -> (i32, i32) {
    %c0_i32 = arith.constant 0 : i32
    %c0_i32_0 = arith.constant 0 : i32
    return %arg0, %c0_i32 : i32, i32
  }
  func.func @transform_2(%arg0: i32) -> (i32, i32) {
    %c0_i32 = arith.constant 0 : i32
    %c0_i32_0 = arith.constant 0 : i32
    return %arg0, %c0_i32 : i32, i32
  }
}

</mosaic_0001>

<llo_original>
// kernel: tpu_custom_call.1
$region0: #{tpu_custom_call.1}
  #allocation0 [shape = 'u32[]', space=smem, size = 0x4, offset = 0x4, fixed_abs, tag = 'smem constant byte address 0x4 - core index']
  #allocation1 [shape = 'u32[144,128]{1,0:T(1,128)}', space=vmem, size = 0x12000, scoped, tag = 'internal scratch']
  #allocation2 [shape = 'f32[1,1]{1,0:T(1,128)S(6)}', space=smem, size = 0x200, scoped, tag = 'scoped memory for tpu_custom_call.1']
  %s0 = inlined_call_operand.<no memory space> [shape: f32[1,1], index: 0, kind: input, shape index: {}]
  %s1 = inlined_call_operand.hbm [shape: f32[1,2048], index: 1, kind: input, shape index: {}, may-alias: {1,2}]
  %s2 = inlined_call_operand.hbm [shape: f32[1,2048], index: 2, kind: output, shape index: {}, may-alias: {1,2}]
  %s3 = sld [smem:[#allocation0]]
  $region22: #{tpu_custom_call.1} parent=0
    _
  %s5 = ssub.s32 1, %s3
  %s6 = scalar_select 0, %s5, %s3
  %7 = sst [smem:[#allocation2]] %s0
  $region1: #{tpu_custom_call.1} parent=0
    #allocation3 [shape = 'u8[8192]{0}', space=vmem, size = 0x2000, scoped, tag = 'input window, operand 1, single buffered']
    #allocation4 [shape = 's32[1]{0}', space=sflag, size = 0x4, scoped, tag = 'scoped memory for tpu_custom_call.1']
    #allocation5 [shape = 's32[1]{0}', space=sflag, size = 0x4, scoped, tag = 'scoped memory for tpu_custom_call.1']
    #allocation6 [shape = 'u8[8192]{0}', space=vmem, size = 0x2000, scoped, tag = 'output window, operand 0, single buffered']
    %8 = vsyncpa [#allocation4], 0
    %9 = vsyncpa [#allocation5], 0
    // Predicated region
    $region2: #{tpu_custom_call.1} parent=1 // pred_check
      _
    $region3: #{tpu_custom_call.1} parent=1 // pred_check_branch
      %11 = sbr.rel (0) target = $region5
    $region4: #{tpu_custom_call.1} parent=1 // pred_region
      _
    $region5: #{tpu_custom_call.1} parent=1 // pred_fallthru
      _
    // Predicated region
    $region6: #{tpu_custom_call.1} parent=1 // pred_check
      _
    $region7: #{tpu_custom_call.1} parent=1 // pred_check_branch
      %13 = sbr.rel (0) target = $region9
    $region8: #{tpu_custom_call.1} parent=1 // pred_region
      %s15 = ssub.s32 256, 256
      %16 = vsyncadd [#allocation4], %s15
      %s18 = sshll.u32 [#allocation3], 4
      %s19 = int_to_ptr.vmem [resolvable:$true] %s18
      %21 = dma.hbm_to_vmem [thread:$0]  %s1, 256, %s19, [#allocation4]
    $region9: #{tpu_custom_call.1} parent=1 // pred_fallthru
      _
    // Predicated region
    $region10: #{tpu_custom_call.1} parent=1 // pred_check
      _
    $region11: #{tpu_custom_call.1} parent=1 // pred_check_branch
      %23 = sbr.rel (0) target = $region13
    $region12: #{tpu_custom_call.1} parent=1 // pred_region
      %24 = dma.done [#allocation4], 256
    $region13: #{tpu_custom_call.1} parent=1 // pred_fallthru
      _
    %v25 = vld [vmem:[#allocation3] sm:$0xff]
    %v26 = vld [vmem:[#allocation3 + $0x8] sm:$0xff]
    %s27 = sld [smem:[#allocation2]]
    %v28 = vstv %s27
    %v29 = vmul.f32 %v25, %v28
    %v30 = vmul.f32 %v26, %v28
    %31 = vst [vmem:[#allocation6] sm:$0xff] %v29
    %32 = vst [vmem:[#allocation6 + $0x8] sm:$0xff] %v30
    // Predicated region
    $region14: #{tpu_custom_call.1} parent=1 // pred_check
      _
    $region15: #{tpu_custom_call.1} parent=1 // pred_check_branch
      %34 = sbr.rel (0) target = $region17
    $region16: #{tpu_custom_call.1} parent=1 // pred_region
      %s36 = ssub.s32 256, 256
      %37 = vsyncadd [#allocation5], %s36
      %s39 = sshll.u32 [#allocation6], 4
      %s40 = int_to_ptr.vmem [resolvable:$true] %s39
      %42 = dma.vmem_to_hbm [thread:$0]  %s40, 256, %s2, [#allocation5]
    $region17: #{tpu_custom_call.1} parent=1 // pred_fallthru
      _
    // Predicated region
    $region18: #{tpu_custom_call.1} parent=1 // pred_check
      _
    $region19: #{tpu_custom_call.1} parent=1 // pred_check_branch
      %44 = sbr.rel (0) target = $region21
    $region20: #{tpu_custom_call.1} parent=1 // pred_region
      %45 = dma.done [#allocation5], 256
    $region21: #{tpu_custom_call.1} parent=1 // pred_fallthru
      _
    %46 = vsyncpa [#allocation4], 1
    %47 = vsyncpa [#allocation5], 1

</llo_original>
